<compile_context>
chip_gen: v5e
topology: v5e:2x2
jax: 0.10.0
libtpu: 0.0.40
codegen_flags: <defaults>
</compile_context>

<pallas_src>
import numpy as np
import jax
import jax.numpy as jnp
from jax.experimental import pallas as pl
from jax.experimental.pallas import tpu as pltpu


# -----------------------------------------------------------------------------
# Host-side triplet mining (index-only; equivalent to generate_all_triplet)
# -----------------------------------------------------------------------------
def _mine_batchall_indices(targets):
    ts = np.asarray(targets).reshape(-1)
    b = ts.shape[0]
    a_idx, p_idx, n_idx, labels = [], [], [], []
    for i in range(b):
        incls = np.nonzero(ts == ts[i])[0]
        outcls = np.nonzero(ts != ts[i])[0]
        if incls.size <= 1 or outcls.size < 1:
            continue
        for iid in incls:
            if iid == i:
                continue
            for oid in outcls:
                a_idx.append(i)
                p_idx.append(iid)
                n_idx.append(oid)
                labels.append(ts[i])
    return (np.asarray(a_idx, np.int32), np.asarray(p_idx, np.int32),
            np.asarray(n_idx, np.int32), labels)


def gettriplet_indices(method, targets):
    if method in ("batchall", "semihard"):
        return _mine_batchall_indices(targets)
    # TODO(synk): 'batchhard' / 'batchrandom' mining not ported (host-side, data-dependent).
    raise NotImplementedError(method)


# -----------------------------------------------------------------------------
# Kernel 1: BxB squared-distance Gram matrix + per-row L1 norms (single block).
# -----------------------------------------------------------------------------
def _gram_l1_kernel(e_ref, d2_ref, l1_ref):
    e = e_ref[...]                                    # (B_pad, D_pad) f32
    b_pad = e.shape[0]
    # Gram matrix on the MXU:  g[i, j] = e_i . e_j  (contract last dims; same
    # pattern as flash-attn q@k^T, no explicit operand transpose needed).
    g = jnp.einsum("id,jd->ij", e, e, preferred_element_type=jnp.float32)
    # Squared norms from the Gram diagonal (guarantees d2[i,i] == 0 exactly).
    ii = jax.lax.broadcasted_iota(jnp.int32, (b_pad, b_pad), 0)
    jj = jax.lax.broadcasted_iota(jnp.int32, (b_pad, b_pad), 1)
    gd = jnp.where(ii == jj, g, 0.0)
    sq_col = jnp.sum(gd, axis=1, keepdims=True)       # (B_pad, 1)  ||e_i||^2
    sq_row = jnp.sum(gd, axis=0, keepdims=True)       # (1, B_pad)  ||e_j||^2
    d2_ref[...] = jnp.maximum(sq_col + sq_row - 2.0 * g, 0.0)
    # Per-row L1 norm, kept as a column so kernel 2 can lane-broadcast it.
    l1_ref[...] = jnp.sum(jnp.abs(e), axis=1, keepdims=True)
    # TODO(synk): for very large D (or on v7x's 64 MiB VMEM) tile the D axis of
    # the Gram computation with a reduction grid instead of one (B_pad, D_pad)
    # block; unnecessary at the small shapes used here.


# -----------------------------------------------------------------------------
# Kernel 2: per-triplet distances + per-triplet L1 sums, tiled over T.
# Everything is lane-dense (1, tile_t) rows; no scalar reductions in-kernel.
# -----------------------------------------------------------------------------
def _triplet_tile_kernel(aidx_ref, pidx_ref, nidx_ref, d2_ref, l1_ref,
                         ap_ref, an_ref, np_ref, l1t_ref):
    a_row = aidx_ref[...]                             # (1, tile_t) int32
    p_row = pidx_ref[...]
    n_row = nidx_ref[...]
    d2 = d2_ref[...]                                  # (b_pad, b_pad), resident
    b_pad = d2.shape[0]
    tile_t = a_row.shape[1]

    # Transposed one-hots:  hotT[j, i] = (j == idx[i]).  Built from a sublane
    # iota vs. the lane-dense index row -> no transposes / column tensors.
    sub = jax.lax.broadcasted_iota(jnp.int32, (b_pad, tile_t), 0)
    a_hot = (sub == a_row).astype(jnp.float32)        # feeds the MXU
    p_hot = (sub == p_row).astype(jnp.float32)        # feeds the MXU + selection
    n_match = sub == n_row                            # bool only; never hits MXU

    # Row gather of the distance matrix on the MXU:
    #   adT[k, i] = d2[k, a_idx[i]],  pdT[k, i] = d2[k, p_idx[i]]
    adT = jnp.dot(d2, a_hot, preferred_element_type=jnp.float32)
    pdT = jnp.dot(d2, p_hot, preferred_element_type=jnp.float32)

    # Per-triplet squared distances as lane-dense (1, tile_t) rows.
    # NOTE: if a v6e/v7x bundle dump shows these sublane reductions binding,
    # route them through the MXU instead: ones((1, b_pad)) @ masked.
    ap_ref[...] = jnp.sum(adT * p_hot, axis=0, keepdims=True)          # ||a-p||^2
    an_ref[...] = jnp.sum(jnp.where(n_match, adT, 0.0), axis=0, keepdims=True)
    np_ref[...] = jnp.sum(jnp.where(n_match, pdT, 0.0), axis=0, keepdims=True)

    # Per-triplet L1 sum  l1[a_t] + l1[p_t] + l1[n_t]  (sparse-term numerator).
    l1b = l1_ref[...]                                  # (b_pad, 1) lane-broadcast
    l1_sel = l1b * (a_hot + p_hot)
    l1t_ref[...] = jnp.sum(jnp.where(n_match, l1_sel + l1b, l1_sel),
                           axis=0, keepdims=True)


def _round_up(x, m):
    return ((x + m - 1) // m) * m


_TILE_T_MAX = 1024


def _pick_tile_t(T, b_pad):
    """Triplets per grid step.

    Per-tile live set ~ 10 * tile_t * b_pad * 4 B (one-hots, gathered rows,
    temporaries) + the resident (b_pad, b_pad) d2.  Keep it well under every
    chip's scoped-VMEM default (v5e 16 MiB, v6e 32 MiB, v7x 32 MiB), and for
    small T shrink the bucket so num_tiles >= 2 and both v7x TensorCores get
    work via the "parallel" grid axis (no-op on single-core v5e/v6e).
    """
    vmem_budget = 12 << 20
    tile = min(_TILE_T_MAX, max(128, (vmem_budget // (10 * b_pad * 4)) // 128 * 128))
    while tile > 128 and T <= tile:
        tile //= 2
    return tile


def triplet_loss_pallas(embeddings, targets, margin=1.0, method="batchall"):
    """Returns (triplet_term, sparse_term, pairwise_term, n_triplets, ap_mean,
    an_mean, ap_distances, an_distances, np_distances)."""
    a_idx, p_idx, n_idx, _labels = gettriplet_indices(method, targets)
    T = int(a_idx.shape[0])
    if T == 0:
        # Mirrors the PyTorch module, where torch.cat of empty lists raises.
        raise ValueError("TripletLoss: no valid triplets could be mined from this batch")

    B, D = embeddings.shape
    B_pad = _round_up(max(B, 128), 128)
    D_pad = _round_up(max(D, 128), 128)
    tile_t = _pick_tile_t(T, B_pad)
    num_tiles = -(-T // tile_t)
    T_pad = num_tiles * tile_t

    # (B, D) embeddings go to the device exactly once, zero-padded.
    e_pad = jnp.zeros((B_pad, D_pad), jnp.float32).at[:B, :D].set(
        jnp.asarray(embeddings, jnp.float32))

    # Lane-dense index rows: triplet t lives at (t // tile_t, 0, t % tile_t).
    def pad_idx(idx):
        out = np.zeros((num_tiles, 1, tile_t), np.int32)
        out.reshape(-1)[:T] = idx
        return jnp.asarray(out)

    a_j, p_j, n_j = pad_idx(a_idx), pad_idx(p_idx), pad_idx(n_idx)

    # ---- kernel 1: Gram matrix + per-row L1 (tiny, runs once) ----
    # TODO(synk): for the 1-2 tile regime this could be folded into kernel 2
    # (persistent VMEM scratch) to save one pallas_call launch + HBM round trip.
    d2, l1_col = pl.pallas_call(
        _gram_l1_kernel,
        out_shape=(jax.ShapeDtypeStruct((B_pad, B_pad), jnp.float32),
                   jax.ShapeDtypeStruct((B_pad, 1), jnp.float32)),
        grid=(1,),
        in_specs=[pl.BlockSpec((B_pad, D_pad), lambda i: (0, 0))],
        out_specs=(pl.BlockSpec((B_pad, B_pad), lambda i: (0, 0)),
                   pl.BlockSpec((B_pad, 1), lambda i: (0, 0))),
        compiler_params=pltpu.CompilerParams(
            dimension_semantics=("arbitrary",)),
    )(e_pad)

    # ---- kernel 2: tiled over T, fully parallel grid, lane-dense I/O ----
    row_spec = pl.BlockSpec((None, 1, tile_t), lambda i: (i, 0, 0))
    row_out = jax.ShapeDtypeStruct((num_tiles, 1, tile_t), jnp.float32)
    ap_r, an_r, np_r, l1_r = pl.pallas_call(
        _triplet_tile_kernel,
        out_shape=(row_out, row_out, row_out, row_out),
        grid=(num_tiles,),
        in_specs=[
            row_spec,                                            # anchor idx
            row_spec,                                            # positive idx
            row_spec,                                            # negative idx
            pl.BlockSpec((B_pad, B_pad), lambda i: (0, 0)),      # d2 (resident)
            pl.BlockSpec((B_pad, 1), lambda i: (0, 0)),          # per-row L1
        ],
        out_specs=(row_spec, row_spec, row_spec, row_spec),
        compiler_params=pltpu.CompilerParams(
            dimension_semantics=("parallel",),
            vmem_limit_bytes=32 * 1024 * 1024),
    )(a_j, p_j, n_j, d2, l1_col)

    # ---- wrapper-side fused reductions over the valid [:T] slice (XLA) ----
    ap = ap_r.reshape(-1)[:T]
    an = an_r.reshape(-1)[:T]
    npd = np_r.reshape(-1)[:T]
    l1t = l1_r.reshape(-1)[:T]

    Tf = jnp.float32(T)
    tl = jnp.maximum(ap - an + margin, 0.0)
    nz = jnp.sum((tl > 0.0).astype(jnp.float32))
    sum_relu = jnp.sum(tl)
    # if no nonzero entries: triplet_loss.mean(); else sum(triplet_loss / non_zero)
    triplet_term = jnp.where(nz == 0.0, sum_relu / Tf,
                             sum_relu / jnp.maximum(nz, 1.0))
    sparse_term = jnp.sum(l1t) / (3.0 * Tf)
    pairwise_term = jnp.maximum(jnp.sum(ap - an - npd) / Tf, 0.0)
    ap_mean = jnp.sum(ap) / Tf
    an_mean = jnp.sum(an) / Tf
    return (triplet_term, sparse_term, pairwise_term, T, ap_mean, an_mean,
            ap, an, npd)


# -----------------------------------------------------------------------------
# Pure-numpy reference (mirrors the PyTorch forward) for correctness check.
# -----------------------------------------------------------------------------
def _reference(embeddings, targets, margin):
    a_idx, p_idx, n_idx, _ = _mine_batchall_indices(targets)
    e = np.asarray(embeddings, np.float64)
    a, p, n = e[a_idx], e[p_idx], e[n_idx]
    ap = ((a - p) ** 2).sum(1)
    an = ((a - n) ** 2).sum(1)
    npd = ((p - n) ** 2).sum(1)
    tl = np.maximum(ap - an + margin, 0.0)
    nz = int(np.count_nonzero(tl))
    triplet_term = tl.mean() if nz == 0 else (tl / nz).sum()
    l1 = lambda v: np.abs(v).sum() / v.shape[0]
    sparse_term = (l1(a) + l1(p) + l1(n)) / 3.0
    pairwise_term = max((ap - an - npd).mean(), 0.0)
    return triplet_term, sparse_term, pairwise_term, len(a_idx), ap.mean(), an.mean()


if __name__ == "__main__":
    key = jax.random.PRNGKey(0)
    B, D = 8, 32
    embeddings = jax.random.normal(key, (B, D), dtype=jnp.float32)
    targets = np.array([0, 0, 1, 1, 0, 1, 0, 1], dtype=np.int32)
    margin = 1.0

    out = triplet_loss_pallas(embeddings, targets, margin=margin, method="batchall")
    out = jax.block_until_ready(out)

    trip, sparse, pair, n_trip, ap_mean, an_mean = (
        float(out[0]), float(out[1]), float(out[2]), out[3],
        float(out[4]), float(out[5]))
    r_trip, r_sparse, r_pair, r_n, r_ap, r_an = _reference(
        np.asarray(embeddings), targets, margin)

    assert n_trip == r_n
    np.testing.assert_allclose(trip, r_trip, rtol=1e-4, atol=1e-4)
    np.testing.assert_allclose(sparse, r_sparse, rtol=1e-4, atol=1e-4)
    np.testing.assert_allclose(pair, r_pair, rtol=1e-4, atol=1e-4)
    np.testing.assert_allclose(ap_mean, r_ap, rtol=1e-4, atol=1e-4)
    np.testing.assert_allclose(an_mean, r_an, rtol=1e-4, atol=1e-4)

    print("KERNEL_OK")
</pallas_src>

<mosaic_0001>
module attributes {stable_mosaic.version = 11 : i64} {
  func.func @_gram_l1_kernel(%arg0: i32, %arg1: memref<128x128xf32, #tpu.memory_space<vmem>>, %arg2: memref<128x128xf32, #tpu.memory_space<vmem>>, %arg3: memref<128x1xf32, #tpu.memory_space<vmem>>) attributes {dimension_semantics = [#tpu.dimension_semantics<arbitrary>], iteration_bounds = array<i64: 1>, scalar_prefetch = 0 : i64, scratch_operands = 0 : i64, tpu.core_type = #tpu.core_type<tc>, window_params = [{pipeline_mode = #tpu.pipeline_mode<synchronous>, transform_indices = @transform_0, window_bounds = array<i64: 128, 128>}, {pipeline_mode = #tpu.pipeline_mode<synchronous>, transform_indices = @transform_1, window_bounds = array<i64: 128, 128>}, {pipeline_mode = #tpu.pipeline_mode<synchronous>, transform_indices = @transform_2, window_bounds = array<i64: 128, 1>}]} {
    %c0 = arith.constant 0 : index
    %c0_0 = arith.constant 0 : index
    %0 = vector.load %arg1[%c0, %c0_0] : memref<128x128xf32, #tpu.memory_space<vmem>>, vector<128x128xf32>
    "tpu.trace_start"() <{level = 10 : i32, message = "id,jd->ij"}> : () -> ()
    %cst = arith.constant dense<0.000000e+00> : vector<128x128xf32>
    %1 = tpu.matmul %0, %0, %cst {dimension_numbers = #tpu.dot_dimension_numbers<[1], [1], [0], [0], [0, 0, 1, 0], [], []>} : vector<128x128xf32>, vector<128x128xf32>, vector<128x128xf32> -> vector<128x128xf32>
    "tpu.trace_stop"() : () -> ()
    %2 = tpu.iota {dimensions = array<i32: 0>} : vector<128x128xi32>
    %3 = tpu.iota {dimensions = array<i32: 1>} : vector<128x128xi32>
    %4 = arith.cmpi eq, %2, %3 : vector<128x128xi32>
    %cst_1 = arith.constant 0.000000e+00 : f32
    %5 = vector.broadcast %cst_1 : f32 to vector<128x128xf32>
    %6 = arith.select %4, %1, %5 : vector<128x128xi1>, vector<128x128xf32>
    %cst_2 = arith.constant dense<0.000000e+00> : vector<128xf32>
    %7 = vector.multi_reduction <add>, %6, %cst_2 [1] : vector<128x128xf32> to vector<128xf32>
    %8 = vector.shape_cast %7 : vector<128xf32> to vector<128x1xf32>
    %cst_3 = arith.constant dense<0.000000e+00> : vector<128xf32>
    %9 = vector.multi_reduction <add>, %6, %cst_3 [0] : vector<128x128xf32> to vector<128xf32>
    %10 = vector.shape_cast %9 : vector<128xf32> to vector<1x128xf32>
    %11 = vector.broadcast %8 : vector<128x1xf32> to vector<128x128xf32>
    %12 = vector.broadcast %10 : vector<1x128xf32> to vector<128x128xf32>
    %13 = arith.addf %11, %12 : vector<128x128xf32>
    %cst_4 = arith.constant 2.000000e+00 : f32
    %14 = vector.broadcast %cst_4 : f32 to vector<128x128xf32>
    %15 = arith.mulf %14, %1 : vector<128x128xf32>
    %16 = arith.subf %13, %15 : vector<128x128xf32>
    %cst_5 = arith.constant 0.000000e+00 : f32
    %17 = vector.broadcast %cst_5 : f32 to vector<128x128xf32>
    %18 = arith.maximumf %16, %17 : vector<128x128xf32>
    %c0_6 = arith.constant 0 : index
    %c0_7 = arith.constant 0 : index
    %19 = vector.load %arg2[%c0_6, %c0_7] : memref<128x128xf32, #tpu.memory_space<vmem>>, vector<128x128xf32>
    tpu.vector_store %arg2[%c0_6, %c0_7], %18 {strides = array<i32>} : memref<128x128xf32, #tpu.memory_space<vmem>>, vector<128x128xf32>,
    %20 = math.absf %0 : vector<128x128xf32>
    %cst_8 = arith.constant dense<0.000000e+00> : vector<128xf32>
    %21 = vector.multi_reduction <add>, %20, %cst_8 [1] : vector<128x128xf32> to vector<128xf32>
    %22 = vector.shape_cast %21 : vector<128xf32> to vector<128x1xf32>
    %c0_9 = arith.constant 0 : index
    %c0_10 = arith.constant 0 : index
    %23 = vector.load %arg3[%c0_9, %c0_10] : memref<128x1xf32, #tpu.memory_space<vmem>>, vector<128x1xf32>
    tpu.vector_store %arg3[%c0_9, %c0_10], %22 {strides = array<i32>} : memref<128x1xf32, #tpu.memory_space<vmem>>, vector<128x1xf32>,
    return
  }
  func.func @transform_0(%arg0: i32) -> (i32, i32) {
    %c0_i32 = arith.constant 0 : i32
    %c0_i32_0 = arith.constant 0 : i32
    %c0_i32_1 = arith.constant 0 : i32
    return %c0_i32, %c0_i32_0 : i32, i32
  }
  func.func @transform_1(%arg0: i32) -> (i32, i32) {
    %c0_i32 = arith.constant 0 : i32
    %c0_i32_0 = arith.constant 0 : i32
    %c0_i32_1 = arith.constant 0 : i32
    return %c0_i32, %c0_i32_0 : i32, i32
  }
  func.func @transform_2(%arg0: i32) -> (i32, i32) {
    %c0_i32 = arith.constant 0 : i32
    %c0_i32_0 = arith.constant 0 : i32
    %c0_i32_1 = arith.constant 0 : i32
    return %c0_i32, %c0_i32_0 : i32, i32
  }
}

</mosaic_0001>

<llo_original>
// kernel: tpu_custom_call.1
$region0: #{tpu_custom_call.1}
  #allocation0 [shape = 'u32[]', space=smem, size = 0x4, offset = 0x4, fixed_abs, tag = 'smem constant byte address 0x4 - core index']
  #allocation1 [shape = 'u32[72,128]{1,0:T(1,128)}', space=vmem, size = 0x9000, scoped, tag = 'internal scratch']
  %s0 = inlined_call_operand.hbm [shape: f32[128,128], index: 0, kind: input, shape index: {}]
  %s1 = inlined_call_operand.hbm [shape: f32[128,128], index: 1, kind: output, shape index: {0}]
  %s2 = inlined_call_operand.vmem [shape: f32[128,1], index: 2, kind: output, shape index: {1}]
  %3 = xla_tuple %s1, %s2
  %s4 = sld [smem:[#allocation0]]
  $region26: #{tpu_custom_call.1} parent=0
    _
  %s6 = ssub.s32 1, %s4
  %s7 = scalar_select 0, %s6, %s4
  $region1: #{tpu_custom_call.1} parent=0
    #allocation2 [shape = 'u8[65536]{0}', space=vmem, size = 0x10000, scoped, tag = 'input window, operand 0, single buffered']
    #allocation3 [shape = 's32[1]{0}', space=sflag, size = 0x4, scoped, tag = 'scoped memory for tpu_custom_call.1']
    #allocation4 [shape = 's32[1]{0}', space=sflag, size = 0x4, scoped, tag = 'scoped memory for tpu_custom_call.1']
    #allocation5 [shape = 'u8[65536]{0}', space=vmem, size = 0x10000, scoped, tag = 'output window, operand 0, single buffered']
    %8 = vsyncpa [#allocation3], 0
    %9 = vsyncpa [#allocation4], 0
    // Predicated region
    $region2: #{tpu_custom_call.1} parent=1 // pred_check
      _
    $region3: #{tpu_custom_call.1} parent=1 // pred_check_branch
      %11 = sbr.rel (0) target = $region5
    $region4: #{tpu_custom_call.1} parent=1 // pred_region
      %13 = vsyncadd [#allocation3], 0
      %s14 = sshll.u32 %s0, 4
      %s15 = int_to_ptr.hbm [resolvable:$true] %s14
      %s16 = sshll.u32 [#allocation2], 4
      %s17 = int_to_ptr.vmem [resolvable:$true] %s16
      %22 = dma.hbm_to_vmem [thread:$0]  %s15, 2048, %s17, [#allocation3], 128, 128, 8
    $region5: #{tpu_custom_call.1} parent=1 // pred_fallthru
      _
    // Predicated region
    $region6: #{tpu_custom_call.1} parent=1 // pred_check
      _
    $region7: #{tpu_custom_call.1} parent=1 // pred_check_branch
      %24 = sbr.rel (0) target = $region9
    $region8: #{tpu_custom_call.1} parent=1 // pred_region
      %26 = dma.done [#allocation3], 2048
    $region9: #{tpu_custom_call.1} parent=1 // pred_fallthru
      _
    %v27 = vld [vmem:[#allocation2] sm:$0xff]
    %v28 = vld [vmem:[#allocation2 + $0x8] sm:$0xff]
    %v29 = vld [vmem:[#allocation2 + $0x10] sm:$0xff]
    %v30 = vld [vmem:[#allocation2 + $0x18] sm:$0xff]
    %v31 = vld [vmem:[#allocation2 + $0x20] sm:$0xff]
    %v32 = vld [vmem:[#allocation2 + $0x28] sm:$0xff]
    %v33 = vld [vmem:[#allocation2 + $0x30] sm:$0xff]
    %v34 = vld [vmem:[#allocation2 + $0x38] sm:$0xff]
    %v35 = vld [vmem:[#allocation2 + $0x40] sm:$0xff]
    %v36 = vld [vmem:[#allocation2 + $0x48] sm:$0xff]
    %v37 = vld [vmem:[#allocation2 + $0x50] sm:$0xff]
    %v38 = vld [vmem:[#allocation2 + $0x58] sm:$0xff]
    %v39 = vld [vmem:[#allocation2 + $0x60] sm:$0xff]
    %v40 = vld [vmem:[#allocation2 + $0x68] sm:$0xff]
    %v41 = vld [vmem:[#allocation2 + $0x70] sm:$0xff]
    %v42 = vld [vmem:[#allocation2 + $0x78] sm:$0xff]
    %43 = vmatpush.xpose.msra.mxu0 %v42
    %44 = vmatpush.xpose.msra.mxu0 %v41
    %45 = vmatpush.xpose.msra.mxu0 %v40
    %46 = vmatpush.xpose.msra.mxu0 %v39
    %47 = vmatpush.xpose.msra.mxu0 %v38
    %48 = vmatpush.xpose.msra.mxu0 %v37
    %49 = vmatpush.xpose.msra.mxu0 %v36
    %50 = vmatpush.xpose.msra.mxu0 %v35
    %51 = vmatpush.xpose.msra.mxu0 %v34
    %52 = vmatpush.xpose.msra.mxu0 %v33
    %53 = vmatpush.xpose.msra.mxu0 %v32
    %54 = vmatpush.xpose.msra.mxu0 %v31
    %55 = vmatpush.xpose.msra.mxu0 %v30
    %56 = vmatpush.xpose.msra.mxu0 %v29
    %57 = vmatpush.xpose.msra.mxu0 %v28
    %58 = vmatpush.xpose.msra.mxu0 %v27
    %59 = vmatmul.f32.gmra.mxu0 %v27
    %v60 = vpop.f32.mrf.mxu0
    %v61 = vadd.f32 0.0, %v60
    %62 = vmatmul.f32.gmra.mxu0 %v28
    %v63 = vpop.f32.mrf.mxu0
    %v64 = vadd.f32 0.0, %v63
    %65 = vmatmul.f32.gmra.mxu0 %v29
    %v66 = vpop.f32.mrf.mxu0
    %v67 = vadd.f32 0.0, %v66
    %68 = vmatmul.f32.gmra.mxu0 %v30
    %v69 = vpop.f32.mrf.mxu0
    %v70 = vadd.f32 0.0, %v69
    %71 = vmatmul.f32.gmra.mxu0 %v31
    %v72 = vpop.f32.mrf.mxu0
    %v73 = vadd.f32 0.0, %v72
    %74 = vmatmul.f32.gmra.mxu0 %v32
    %v75 = vpop.f32.mrf.mxu0
    %v76 = vadd.f32 0.0, %v75
    %77 = vmatmul.f32.gmra.mxu0 %v33
    %v78 = vpop.f32.mrf.mxu0
    %v79 = vadd.f32 0.0, %v78
    %80 = vmatmul.f32.gmra.mxu0 %v34
    %v81 = vpop.f32.mrf.mxu0
    %v82 = vadd.f32 0.0, %v81
    %83 = vmatmul.f32.gmra.mxu0 %v35
    %v84 = vpop.f32.mrf.mxu0
    %v85 = vadd.f32 0.0, %v84
    %86 = vmatmul.f32.gmra.mxu0 %v36
    %v87 = vpop.f32.mrf.mxu0
    %v88 = vadd.f32 0.0, %v87
    %89 = vmatmul.f32.gmra.mxu0 %v37
    %v90 = vpop.f32.mrf.mxu0
    %v91 = vadd.f32 0.0, %v90
    %92 = vmatmul.f32.gmra.mxu0 %v38
    %v93 = vpop.f32.mrf.mxu0
    %v94 = vadd.f32 0.0, %v93
    %95 = vmatmul.f32.gmra.mxu0 %v39
    %v96 = vpop.f32.mrf.mxu0
    %v97 = vadd.f32 0.0, %v96
    %98 = vmatmul.f32.gmra.mxu0 %v40
    %v99 = vpop.f32.mrf.mxu0
    %v100 = vadd.f32 0.0, %v99
    %101 = vmatmul.f32.gmra.mxu0 %v41
    %v102 = vpop.f32.mrf.mxu0
    %v103 = vadd.f32 0.0, %v102
    %104 = vmatmul.f32.gmra.mxu0 %v42
    %v105 = vpop.f32.mrf.mxu0
    %v106 = vadd.f32 0.0, %v105
    %107 = vdwg.mxu0
    %v108 = vlaneseq
    %v109 = vshrl.u32 %v108, 7
    %v110 = vadd.s32 %v109, 8
    %v111 = vadd.s32 %v109, 16
    %v112 = vadd.s32 %v109, 24
    %v113 = vadd.s32 %v109, 32
    %v114 = vadd.s32 %v109, 40
    %v115 = vadd.s32 %v109, 48
    %v116 = vadd.s32 %v109, 56
    %v117 = vadd.s32 %v109, 64
    %v118 = vadd.s32 %v109, 72
    %v119 = vadd.s32 %v109, 80
    %v120 = vadd.s32 %v109, 88
    %v121 = vadd.s32 %v109, 96
    %v122 = vadd.s32 %v109, 104
    %v123 = vadd.s32 %v109, 112
    %v124 = vadd.s32 %v109, 120
    %v125 = vlaneseq
    %v126 = vand.u32 %v125, 127
    %vm127 = vcmp.eq.s32.totalorder %v109, %v126
    %vm128 = vcmp.eq.s32.totalorder %v110, %v126
    %vm129 = vcmp.eq.s32.totalorder %v111, %v126
    %vm130 = vcmp.eq.s32.totalorder %v112, %v126
    %vm131 = vcmp.eq.s32.totalorder %v113, %v126
    %vm132 = vcmp.eq.s32.totalorder %v114, %v126
    %vm133 = vcmp.eq.s32.totalorder %v115, %v126
    %vm134 = vcmp.eq.s32.totalorder %v116, %v126
    %vm135 = vcmp.eq.s32.totalorder %v117, %v126
    %vm136 = vcmp.eq.s32.totalorder %v118, %v126
    %vm137 = vcmp.eq.s32.totalorder %v119, %v126
    %vm138 = vcmp.eq.s32.totalorder %v120, %v126
    %vm139 = vcmp.eq.s32.totalorder %v121, %v126
    %vm140 = vcmp.eq.s32.totalorder %v122, %v126
    %vm141 = vcmp.eq.s32.totalorder %v123, %v126
    %vm142 = vcmp.eq.s32.totalorder %v124, %v126
    %v143 = vsel %vm127, %v61, 0.0
    %v144 = vsel %vm128, %v64, 0.0
    %v145 = vsel %vm129, %v67, 0.0
    %v146 = vsel %vm130, %v70, 0.0
    %v147 = vsel %vm131, %v73, 0.0
    %v148 = vsel %vm132, %v76, 0.0
    %v149 = vsel %vm133, %v79, 0.0
    %v150 = vsel %vm134, %v82, 0.0
    %v151 = vsel %vm135, %v85, 0.0
    %v152 = vsel %vm136, %v88, 0.0
    %v153 = vsel %vm137, %v91, 0.0
    %v154 = vsel %vm138, %v94, 0.0
    %v155 = vsel %vm139, %v97, 0.0
    %v156 = vsel %vm140, %v100, 0.0
    %v157 = vsel %vm141, %v103, 0.0
    %v158 = vsel %vm142, %v106, 0.0
    %159 = vadd.xlane.f32.xlu0 %v143
    %v160 = vpop.xlane.xlu0 %159
    %161 = vadd.xlane.f32.xlu0 %v144
    %v162 = vpop.xlane.xlu0 %161
    %163 = vadd.xlane.f32.xlu0 %v145
    %v164 = vpop.xlane.xlu0 %163
    %165 = vadd.xlane.f32.xlu0 %v146
    %v166 = vpop.xlane.xlu0 %165
    %167 = vadd.xlane.f32.xlu0 %v147
    %v168 = vpop.xlane.xlu0 %167
    %169 = vadd.xlane.f32.xlu0 %v148
    %v170 = vpop.xlane.xlu0 %169
    %171 = vadd.xlane.f32.xlu0 %v149
    %v172 = vpop.xlane.xlu0 %171
    %173 = vadd.xlane.f32.xlu0 %v150
    %v174 = vpop.xlane.xlu0 %173
    %175 = vadd.xlane.f32.xlu0 %v151
    %v176 = vpop.xlane.xlu0 %175
    %177 = vadd.xlane.f32.xlu0 %v152
    %v178 = vpop.xlane.xlu0 %177
    %179 = vadd.xlane.f32.xlu0 %v153
    %v180 = vpop.xlane.xlu0 %179
    %181 = vadd.xlane.f32.xlu0 %v154
    %v182 = vpop.xlane.xlu0 %181
    %183 = vadd.xlane.f32.xlu0 %v155
    %v184 = vpop.xlane.xlu0 %183
    %185 = vadd.xlane.f32.xlu0 %v156
    %v186 = vpop.xlane.xlu0 %185
    %187 = vadd.xlane.f32.xlu0 %v157
    %v188 = vpop.xlane.xlu0 %187
    %189 = vadd.xlane.f32.xlu0 %v158
    %v190 = vpop.xlane.xlu0 %189
    %v191 = vadd.f32 %v143, %v144
    %v192 = vadd.f32 %v191, %v145
    %v193 = vadd.f32 %v192, %v146
    %v194 = vadd.f32 %v193, %v147
    %v195 = vadd.f32 %v194, %v148
    %v196 = vadd.f32 %v195, %v149
    %v197 = vadd.f32 %v196, %v150
    %v198 = vadd.f32 %v197, %v151
    %v199 = vadd.f32 %v198, %v152
    %v200 = vadd.f32 %v199, %v153
    %v201 = vadd.f32 %v200, %v154
    %v202 = vadd.f32 %v201, %v155
    %v203 = vadd.f32 %v202, %v156
    %v204 = vadd.f32 %v203, %v157
    %v205 = vadd.f32 %v204, %v158
    %v206 = vrot.slane %v205, 4
    %v207 = vadd.f32 %v205, %v206
    %v208 = vrot.slane %v207, 2
    %v209 = vadd.f32 %v207, %v208
    %v210 = vrot.slane %v209, 1
    %v211 = vadd.f32 %v209, %v210
    %v212 = vadd.f32 %v160, %v211
    %v213 = vadd.f32 %v162, %v211
    %v214 = vadd.f32 %v164, %v211
    %v215 = vadd.f32 %v166, %v211
    %v216 = vadd.f32 %v168, %v211
    %v217 = vadd.f32 %v170, %v211
    %v218 = vadd.f32 %v172, %v211
    %v219 = vadd.f32 %v174, %v211
    %v220 = vadd.f32 %v176, %v211
    %v221 = vadd.f32 %v178, %v211
    %v222 = vadd.f32 %v180, %v211
    %v223 = vadd.f32 %v182, %v211
    %v224 = vadd.f32 %v184, %v211
    %v225 = vadd.f32 %v186, %v211
    %v226 = vadd.f32 %v188, %v211
    %v227 = vadd.f32 %v190, %v211
    %v228 = vmul.f32 %v61, 2.0
    %v229 = vmul.f32 %v64, 2.0
    %v230 = vmul.f32 %v67, 2.0
    %v231 = vmul.f32 %v70, 2.0
    %v232 = vmul.f32 %v73, 2.0
    %v233 = vmul.f32 %v76, 2.0
    %v234 = vmul.f32 %v79, 2.0
    %v235 = vmul.f32 %v82, 2.0
    %v236 = vmul.f32 %v85, 2.0
    %v237 = vmul.f32 %v88, 2.0
    %v238 = vmul.f32 %v91, 2.0
    %v239 = vmul.f32 %v94, 2.0
    %v240 = vmul.f32 %v97, 2.0
    %v241 = vmul.f32 %v100, 2.0
    %v242 = vmul.f32 %v103, 2.0
    %v243 = vmul.f32 %v106, 2.0
    %v244 = vsub.f32 %v212, %v228
    %v245 = vsub.f32 %v213, %v229
    %v246 = vsub.f32 %v214, %v230
    %v247 = vsub.f32 %v215, %v231
    %v248 = vsub.f32 %v216, %v232
    %v249 = vsub.f32 %v217, %v233
    %v250 = vsub.f32 %v218, %v234
    %v251 = vsub.f32 %v219, %v235
    %v252 = vsub.f32 %v220, %v236
    %v253 = vsub.f32 %v221, %v237
    %v254 = vsub.f32 %v222, %v238
    %v255 = vsub.f32 %v223, %v239
    %v256 = vsub.f32 %v224, %v240
    %v257 = vsub.f32 %v225, %v241
    %v258 = vsub.f32 %v226, %v242
    %v259 = vsub.f32 %v227, %v243
    %v260 = vmax.f32 %v244, 0.0
    %v261 = vmax.f32 %v245, 0.0
    %v262 = vmax.f32 %v246, 0.0
    %v263 = vmax.f32 %v247, 0.0
    %v264 = vmax.f32 %v248, 0.0
    %v265 = vmax.f32 %v249, 0.0
    %v266 = vmax.f32 %v250, 0.0
    %v267 = vmax.f32 %v251, 0.0
    %v268 = vmax.f32 %v252, 0.0
    %v269 = vmax.f32 %v253, 0.0
    %v270 = vmax.f32 %v254, 0.0
    %v271 = vmax.f32 %v255, 0.0
    %v272 = vmax.f32 %v256, 0.0
    %v273 = vmax.f32 %v257, 0.0
    %v274 = vmax.f32 %v258, 0.0
    %v275 = vmax.f32 %v259, 0.0
    %276 = vst [vmem:[#allocation5] sm:$0xff] %v260
    %277 = vst [vmem:[#allocation5 + $0x8] sm:$0xff] %v261
    %278 = vst [vmem:[#allocation5 + $0x10] sm:$0xff] %v262
    %279 = vst [vmem:[#allocation5 + $0x18] sm:$0xff] %v263
    %280 = vst [vmem:[#allocation5 + $0x20] sm:$0xff] %v264
    %281 = vst [vmem:[#allocation5 + $0x28] sm:$0xff] %v265
    %282 = vst [vmem:[#allocation5 + $0x30] sm:$0xff] %v266
    %283 = vst [vmem:[#allocation5 + $0x38] sm:$0xff] %v267
    %284 = vst [vmem:[#allocation5 + $0x40] sm:$0xff] %v268
    %285 = vst [vmem:[#allocation5 + $0x48] sm:$0xff] %v269
    %286 = vst [vmem:[#allocation5 + $0x50] sm:$0xff] %v270
    %287 = vst [vmem:[#allocation5 + $0x58] sm:$0xff] %v271
    %288 = vst [vmem:[#allocation5 + $0x60] sm:$0xff] %v272
    %289 = vst [vmem:[#allocation5 + $0x68] sm:$0xff] %v273
    %290 = vst [vmem:[#allocation5 + $0x70] sm:$0xff] %v274
    %291 = vst [vmem:[#allocation5 + $0x78] sm:$0xff] %v275
    %v292 = vand.u32 2147483647, %v27
    %v293 = vand.u32 2147483647, %v28
    %v294 = vand.u32 2147483647, %v29
    %v295 = vand.u32 2147483647, %v30
    %v296 = vand.u32 2147483647, %v31
    %v297 = vand.u32 2147483647, %v32
    %v298 = vand.u32 2147483647, %v33
    %v299 = vand.u32 2147483647, %v34
    %v300 = vand.u32 2147483647, %v35
    %v301 = vand.u32 2147483647, %v36
    %v302 = vand.u32 2147483647, %v37
    %v303 = vand.u32 2147483647, %v38
    %v304 = vand.u32 2147483647, %v39
    %v305 = vand.u32 2147483647, %v40
    %v306 = vand.u32 2147483647, %v41
    %v307 = vand.u32 2147483647, %v42
    %308 = vadd.xlane.f32.xlu0 %v292
    %v309 = vpop.xlane.xlu0 %308
    %310 = vadd.xlane.f32.xlu0 %v293
    %v311 = vpop.xlane.xlu0 %310
    %312 = vadd.xlane.f32.xlu0 %v294
    %v313 = vpop.xlane.xlu0 %312
    %314 = vadd.xlane.f32.xlu0 %v295
    %v315 = vpop.xlane.xlu0 %314
    %316 = vadd.xlane.f32.xlu0 %v296
    %v317 = vpop.xlane.xlu0 %316
    %318 = vadd.xlane.f32.xlu0 %v297
    %v319 = vpop.xlane.xlu0 %318
    %320 = vadd.xlane.f32.xlu0 %v298
    %v321 = vpop.xlane.xlu0 %320
    %322 = vadd.xlane.f32.xlu0 %v299
    %v323 = vpop.xlane.xlu0 %322
    %324 = vadd.xlane.f32.xlu0 %v300
    %v325 = vpop.xlane.xlu0 %324
    %326 = vadd.xlane.f32.xlu0 %v301
    %v327 = vpop.xlane.xlu0 %326
    %328 = vadd.xlane.f32.xlu0 %v302
    %v329 = vpop.xlane.xlu0 %328
    %330 = vadd.xlane.f32.xlu0 %v303
    %v331 = vpop.xlane.xlu0 %330
    %332 = vadd.xlane.f32.xlu0 %v304
    %v333 = vpop.xlane.xlu0 %332
    %334 = vadd.xlane.f32.xlu0 %v305
    %v335 = vpop.xlane.xlu0 %334
    %336 = vadd.xlane.f32.xlu0 %v306
    %v337 = vpop.xlane.xlu0 %336
    %338 = vadd.xlane.f32.xlu0 %v307
    %v339 = vpop.xlane.xlu0 %338
    %vm340 = vcmask 7168
    %341 = vst.msk [vmem:[%s2] sm:$0xff] %vm340, %v309
    %342 = vst.msk [vmem:[%s2 + $0x8] sm:$0xff] %vm340, %v311
    %343 = vst.msk [vmem:[%s2 + $0x10] sm:$0xff] %vm340, %v313
    %344 = vst.msk [vmem:[%s2 + $0x18] sm:$0xff] %vm340, %v315
    %345 = vst.msk [vmem:[%s2 + $0x20] sm:$0xff] %vm340, %v317
    %346 = vst.msk [vmem:[%s2 + $0x28] sm:$0xff] %vm340, %v319
    %347 = vst.msk [vmem:[%s2 + $0x30] sm:$0xff] %vm340, %v321
    %348 = vst.msk [vmem:[%s2 + $0x38] sm:$0xff] %vm340, %v323
    %349 = vst.msk [vmem:[%s2 + $0x40] sm:$0xff] %vm340, %v325
    %350 = vst.msk [vmem:[%s2 + $0x48] sm:$0xff] %vm340, %v327
    %351 = vst.msk [vmem:[%s2 + $0x50] sm:$0xff] %vm340, %v329
    %352 = vst.msk [vmem:[%s2 + $0x58] sm:$0xff] %vm340, %v331
    %353 = vst.msk [vmem:[%s2 + $0x60] sm:$0xff] %vm340, %v333
    %354 = vst.msk [vmem:[%s2 + $0x68] sm:$0xff] %vm340, %v335
    %355 = vst.msk [vmem:[%s2 + $0x70] sm:$0xff] %vm340, %v337
    %356 = vst.msk [vmem:[%s2 + $0x78] sm:$0xff] %vm340, %v339
    // Predicated region
    $region10: #{tpu_custom_call.1} parent=1 // pred_check
      _
    $region11: #{tpu_custom_call.1} parent=1 // pred_check_branch
      %358 = sbr.rel (0) target = $region13
    $region12: #{tpu_custom_call.1} parent=1 // pred_region
      %360 = vsyncadd [#allocation4], 0
      %s361 = sshll.u32 [#allocation5], 4
      %s362 = int_to_ptr.vmem [resolvable:$true] %s361
      %s363 = sshll.u32 %s1, 4
      %s364 = int_to_ptr.hbm [resolvable:$true] %s363
      %369 = dma.vmem_to_hbm [thread:$0]  %s362, 2048, %s364, [#allocation4], 128, 128, 8
    $region13: #{tpu_custom_call.1} parent=1 // pred_fallthru
      _
    // Predicated region
    $region14: #{tpu_custom_call.1} parent=1 // pred_check
      _
    $region15: #{tpu_custom_call.1} parent=1 // pred_check_branch
      %371 = sbr.rel (0) target = $region17
    $region16: #{tpu_custom_call.1} parent=1 // pred_region
      _
    $region17: #{tpu_custom_call.1} parent=1 // pred_fallthru
      _
    // Predicated region
    $region18: #{tpu_custom_call.1} parent=1 // pred_check
      _
    $region19: #{tpu_custom_call.1} parent=1 // pred_check_branch
      %373 = sbr.rel (0) target = $region21
    $region20: #{tpu_custom_call.1} parent=1 // pred_region
      %375 = dma.done [#allocation4], 2048
    $region21: #{tpu_custom_call.1} parent=1 // pred_fallthru
      _
    // Predicated region
    $region22: #{tpu_custom_call.1} parent=1 // pred_check
      _
    $region23: #{tpu_custom_call.1} parent=1 // pred_check_branch
      %377 = sbr.rel (0) target = $region25
    $region24: #{tpu_custom_call.1} parent=1 // pred_region
      _
    $region25: #{tpu_custom_call.1} parent=1 // pred_fallthru
      _
    %378 = vsyncpa [#allocation3], 1
    %379 = vsyncpa [#allocation4], 1

</llo_original>
